<compile_context>
chip_gen: v6e
topology: v6e:2x2x1
jax: 0.10.0
libtpu: 0.0.40
codegen_flags: <defaults>
</compile_context>

<pallas_src>
import functools

import jax
import jax.numpy as jnp
from jax.experimental import pallas as pl
from jax.experimental.pallas import tpu as pltpu


def _round_up(a, b):
    return ((a + b - 1) // b) * b


def _chip_vmem_bytes():
    try:
        return int(pltpu.get_tpu_info().vmem_capacity_bytes)
    except Exception:
        return 64 << 20  # conservative (v7x-sized) fallback


def _default_tile_n():
    # 128-MiB-VMEM chips (v5e/v6e) can afford bigger streaming tiles than
    # v7x (64 MiB per TensorCore).
    return 4096 if _chip_vmem_bytes() >= (100 << 20) else 2048


def _pick_tile_n(n, tile_n):
    # Lane-dense transposed output requires tile_n % 128 == 0 unless a single
    # block covers the whole N axis.
    tile_n = max(128, (int(tile_n) // 128) * 128)
    if n < 256:
        return n  # one block; block dims equal the full array dims
    # Guarantee >= 2 grid steps so the "parallel" N axis shards across v7x's
    # two TensorCores, while keeping the tile a multiple of 128.
    return min(tile_n, _round_up(pl.cdiv(n, 2), 128))


def fchead_kernel(x_ref, wexp_ref, bfc_ref, wheadT_ref, bheadT_ref, out_ref):
    # x_ref:      [tile_n, K]   input tile (mean-pool folded into W_exp)
    # wexp_ref:   [K, D]        expanded fc weight (already divided by HW)
    # bfc_ref:    [1, D]        fc bias (f32)
    # wheadT_ref: [2, D]        rows: (fc_o.weight, fc_a.weight) (f32)
    # bheadT_ref: [2, 1]        (fc_o.bias, fc_a.bias) (f32)
    # out_ref:    [2, tile_n]   row 0 = offset, row 1 = angle (lane-dense)
    h = jnp.dot(x_ref[...], wexp_ref[...],
                preferred_element_type=jnp.float32) + bfc_ref[...]
    h = jnp.maximum(h, 0.0)                                  # [tile_n, D] f32
    # Lane-dense head: (2, D) x (tile_n, D)^T -> (2, tile_n) straight off the
    # MXU, no in-kernel transpose.  Default MXU precision (bf16 truncation of
    # the f32 operands) is accepted deliberately: the contraction is only
    # D = 32 wide and the error is far below the head's useful precision.
    res = jax.lax.dot_general(
        wheadT_ref[...], h,
        dimension_numbers=(((1,), (1,)), ((), ())),
        preferred_element_type=jnp.float32)
    out_ref[...] = (res + bheadT_ref[...]).astype(out_ref.dtype)


@functools.partial(jax.jit, static_argnames=("tile_n",))
def _fchead_forward(x, params, tile_n):
    B, S, C, H, W = x.shape
    N, HW = B * S, H * W
    K = C * HW

    wfc, bfc, wo, bo, wa, ba = params
    D = wfc.shape[0]

    # ---- input prep: flatten (C,H,W) onto the lane axis; keep x's dtype
    # (feed bf16 from upstream for half the HBM read traffic).
    x2d = x.reshape(N, K)

    # ---- parameter prep (tiny, one-time): fuse pool into fc, merge heads.
    # W_exp[c*HW + hw, d] = wfc[d, c] / HW  ->  x2d @ W_exp == mean-pool + fc
    wexp = (jnp.repeat(wfc.T, HW, axis=0) / jnp.float32(HW)).astype(x2d.dtype)
    bfc_r = bfc.reshape(1, D).astype(jnp.float32)
    wheadT = jnp.concatenate([wo, wa], axis=0).astype(jnp.float32)      # [2, D]
    bheadT = jnp.concatenate([bo, ba]).reshape(2, 1).astype(jnp.float32)

    tn = _pick_tile_n(N, tile_n)
    grid = (pl.cdiv(N, tn),)   # ragged last block is fine: outputs are per-row

    # VMEM: double-buffered x/out tiles + resident weights, plus headroom;
    # capped at 3/4 of the chip's physical VMEM.
    isz = jnp.dtype(x2d.dtype).itemsize
    need = (2 * tn * K * isz              # double-buffered x tiles
            + 2 * 2 * tn * 4              # double-buffered out tiles (f32)
            + K * D * isz + (D + 2 * D + 2) * 4)   # resident params
    vmem_limit = int(min(max(need + (4 << 20), 16 << 20),
                         _chip_vmem_bytes() * 3 // 4))

    out = pl.pallas_call(
        fchead_kernel,
        out_shape=jax.ShapeDtypeStruct((2, N), jnp.float32),
        grid_spec=pltpu.PrefetchScalarGridSpec(
            num_scalar_prefetch=0,
            grid=grid,
            in_specs=[
                pl.BlockSpec((tn, K), lambda i: (i, 0)),   # x tile (streamed)
                pl.BlockSpec((K, D), lambda i: (0, 0)),    # W_exp (resident)
                pl.BlockSpec((1, D), lambda i: (0, 0)),    # fc bias
                pl.BlockSpec((2, D), lambda i: (0, 0)),    # head weights
                pl.BlockSpec((2, 1), lambda i: (0, 0)),    # head biases
            ],
            out_specs=pl.BlockSpec((2, tn), lambda i: (0, i)),
        ),
        compiler_params=pltpu.CompilerParams(
            dimension_semantics=("parallel",),
            vmem_limit_bytes=vmem_limit,
        ),
    )(x2d, wexp, bfc_r, wheadT, bheadT)

    offset = out[0].reshape(B, S, 1)
    angle = out[1].reshape(B, S, 1)
    return offset, angle


def fchead_forward(x, params, tile_n=None):
    """x: [B, S, C, H, W]. Returns (offset, angle), each [B, S, 1] float32."""
    if tile_n is None:
        tile_n = _default_tile_n()
    return _fchead_forward(x, params, int(tile_n))


def init_params(key, input_dim, output_dim):
    """Deterministic synthetic parameters matching nn.Linear shapes."""
    k1, k2, k3, k4, k5, k6 = jax.random.split(key, 6)
    wfc = jax.random.normal(k1, (output_dim, input_dim), jnp.float32) * 0.1
    bfc = jax.random.normal(k2, (output_dim,), jnp.float32) * 0.1
    wo = jax.random.normal(k3, (1, output_dim), jnp.float32) * 0.1
    bo = jax.random.normal(k4, (1,), jnp.float32) * 0.1
    wa = jax.random.normal(k5, (1, output_dim), jnp.float32) * 0.1
    ba = jax.random.normal(k6, (1,), jnp.float32) * 0.1
    return wfc, bfc, wo, bo, wa, ba


def reference_forward(x, params):
    """Pure-JAX f32 reference for correctness check."""
    wfc, bfc, wo, bo, wa, ba = params
    B, S, C, H, W = x.shape
    feat = x.reshape(B * S, C, H * W).mean(axis=-1).reshape(B, S, C)
    h = jnp.maximum(feat @ wfc.T + bfc, 0.0)
    return h @ wo.T + bo, h @ wa.T + ba


if __name__ == "__main__":
    key = jax.random.PRNGKey(0)
    kx, kp = jax.random.split(key)

    B, S, C, H, W = 2, 8, 4, 16, 16   # input_dim = C = 4
    output_dim = 32

    x = jax.random.normal(kx, (B, S, C, H, W), jnp.float32)
    params = init_params(kp, input_dim=C, output_dim=output_dim)

    # Simulate the upstream producer emitting bf16 activations (halves the
    # HBM read inside the kernel); accumulation stays f32 in the kernel.
    x_bf16 = x.astype(jnp.bfloat16)

    offset, angle = fchead_forward(x_bf16, params)
    jax.block_until_ready((offset, angle))

    # Reference on the same (bf16-rounded) activations, in full f32.
    ref_off, ref_ang = reference_forward(x_bf16.astype(jnp.float32), params)
    assert offset.shape == (B, S, 1) and angle.shape == (B, S, 1)
    # Tolerance covers the deliberate bf16 weights/activations and default
    # (bf16) MXU precision on the tiny D=32 head contraction.
    assert jnp.allclose(offset, ref_off, atol=2e-3, rtol=2e-2)
    assert jnp.allclose(angle, ref_ang, atol=2e-3, rtol=2e-2)

    print("KERNEL_OK")
</pallas_src>

<mosaic_0001>
module attributes {stable_mosaic.version = 11 : i64} {
  func.func @fchead_kernel(%arg0: i32, %arg1: memref<16x1024xbf16, #tpu.memory_space<vmem>>, %arg2: memref<1024x32xbf16, #tpu.memory_space<vmem>>, %arg3: memref<1x32xf32, #tpu.memory_space<vmem>>, %arg4: memref<2x32xf32, #tpu.memory_space<vmem>>, %arg5: memref<2x1xf32, #tpu.memory_space<vmem>>, %arg6: memref<2x16xf32, #tpu.memory_space<vmem>>) attributes {dimension_semantics = [#tpu.dimension_semantics<parallel>], iteration_bounds = array<i64: 1>, scalar_prefetch = 0 : i64, scratch_operands = 0 : i64, tpu.core_type = #tpu.core_type<tc>, window_params = [{transform_indices = @transform_0, window_bounds = array<i64: 16, 1024>}, {pipeline_mode = #tpu.pipeline_mode<synchronous>, transform_indices = @transform_1, window_bounds = array<i64: 1024, 32>}, {pipeline_mode = #tpu.pipeline_mode<synchronous>, transform_indices = @transform_2, window_bounds = array<i64: 1, 32>}, {pipeline_mode = #tpu.pipeline_mode<synchronous>, transform_indices = @transform_3, window_bounds = array<i64: 2, 32>}, {pipeline_mode = #tpu.pipeline_mode<synchronous>, transform_indices = @transform_4, window_bounds = array<i64: 2, 1>}, {transform_indices = @transform_5, window_bounds = array<i64: 2, 16>}]} {
    %c0 = arith.constant 0 : index
    %c0_0 = arith.constant 0 : index
    %0 = vector.load %arg1[%c0, %c0_0] : memref<16x1024xbf16, #tpu.memory_space<vmem>>, vector<16x1024xbf16>
    %c0_1 = arith.constant 0 : index
    %c0_2 = arith.constant 0 : index
    %1 = vector.load %arg2[%c0_1, %c0_2] : memref<1024x32xbf16, #tpu.memory_space<vmem>>, vector<1024x32xbf16>
    %cst = arith.constant dense<0.000000e+00> : vector<16x32xf32>
    %2 = tpu.matmul %0, %1, %cst {dimension_numbers = #tpu.dot_dimension_numbers<[1], [0], [0], [1], [0, 0, 1, 1], [], []>} : vector<16x1024xbf16>, vector<1024x32xbf16>, vector<16x32xf32> -> vector<16x32xf32>
    %c0_3 = arith.constant 0 : index
    %c0_4 = arith.constant 0 : index
    %3 = vector.load %arg3[%c0_3, %c0_4] : memref<1x32xf32, #tpu.memory_space<vmem>>, vector<1x32xf32>
    %4 = vector.broadcast %3 : vector<1x32xf32> to vector<16x32xf32>
    %5 = arith.addf %2, %4 : vector<16x32xf32>
    %cst_5 = arith.constant 0.000000e+00 : f32
    %6 = vector.broadcast %cst_5 : f32 to vector<16x32xf32>
    %7 = arith.maximumf %5, %6 : vector<16x32xf32>
    %c0_6 = arith.constant 0 : index
    %c0_7 = arith.constant 0 : index
    %8 = vector.load %arg4[%c0_6, %c0_7] : memref<2x32xf32, #tpu.memory_space<vmem>>, vector<2x32xf32>
    %cst_8 = arith.constant dense<0.000000e+00> : vector<2x16xf32>
    %9 = tpu.matmul %8, %7, %cst_8 {dimension_numbers = #tpu.dot_dimension_numbers<[1], [1], [0], [0], [0, 0, 1, 0], [], []>} : vector<2x32xf32>, vector<16x32xf32>, vector<2x16xf32> -> vector<2x16xf32>
    %c0_9 = arith.constant 0 : index
    %c0_10 = arith.constant 0 : index
    %10 = vector.load %arg5[%c0_9, %c0_10] : memref<2x1xf32, #tpu.memory_space<vmem>>, vector<2x1xf32>
    %11 = vector.broadcast %10 : vector<2x1xf32> to vector<2x16xf32>
    %12 = arith.addf %9, %11 : vector<2x16xf32>
    %c0_11 = arith.constant 0 : index
    %c0_12 = arith.constant 0 : index
    %13 = vector.load %arg6[%c0_11, %c0_12] : memref<2x16xf32, #tpu.memory_space<vmem>>, vector<2x16xf32>
    tpu.vector_store %arg6[%c0_11, %c0_12], %12 {strides = array<i32>} : memref<2x16xf32, #tpu.memory_space<vmem>>, vector<2x16xf32>,
    return
  }
  func.func @transform_0(%arg0: i32) -> (i32, i32) {
    %c0_i32 = arith.constant 0 : i32
    %c0_i32_0 = arith.constant 0 : i32
    return %arg0, %c0_i32 : i32, i32
  }
  func.func @transform_1(%arg0: i32) -> (i32, i32) {
    %c0_i32 = arith.constant 0 : i32
    %c0_i32_0 = arith.constant 0 : i32
    %c0_i32_1 = arith.constant 0 : i32
    return %c0_i32, %c0_i32_0 : i32, i32
  }
  func.func @transform_2(%arg0: i32) -> (i32, i32) {
    %c0_i32 = arith.constant 0 : i32
    %c0_i32_0 = arith.constant 0 : i32
    %c0_i32_1 = arith.constant 0 : i32
    return %c0_i32, %c0_i32_0 : i32, i32
  }
  func.func @transform_3(%arg0: i32) -> (i32, i32) {
    %c0_i32 = arith.constant 0 : i32
    %c0_i32_0 = arith.constant 0 : i32
    %c0_i32_1 = arith.constant 0 : i32
    return %c0_i32, %c0_i32_0 : i32, i32
  }
  func.func @transform_4(%arg0: i32) -> (i32, i32) {
    %c0_i32 = arith.constant 0 : i32
    %c0_i32_0 = arith.constant 0 : i32
    %c0_i32_1 = arith.constant 0 : i32
    return %c0_i32, %c0_i32_0 : i32, i32
  }
  func.func @transform_5(%arg0: i32) -> (i32, i32) {
    %c0_i32 = arith.constant 0 : i32
    %c0_i32_0 = arith.constant 0 : i32
    return %c0_i32, %arg0 : i32, i32
  }
}

</mosaic_0001>

<llo_original>
// kernel: squeeze.3
$region0: #{squeeze.3}
  %s0 = inlined_call_operand.vmem [shape: f32[16], index: 0, kind: input, shape index: {}]
  %s1 = inlined_call_operand.hbm [shape: f32[2,8,1], index: 1, kind: output, shape index: {}]
  $region1: #{squeeze.3} parent=0
    #allocation0 [shape = 'u8[1024]{0}', space=vmem, size = 0x400, scoped, tag = 'operand span for operand 1']
    #allocation1 [shape = 's32[1]{0}', space=sflag, size = 0x4, scoped, tag = 'scoped memory for squeeze.3']
    #allocation2 [shape = 'u8[4096]{0}', space=vmem, size = 0x1000, scoped, tag = 'scoped mem for output reshape']
    #allocation3 [shape = 'u8[4096]{0}', space=vmem, size = 0x1000, scoped, tag = 'scoped mem for input reshape']
    %2 = vsyncpa [#allocation1], 0
    %s4 = sshll.u32 1, 1
    %s5 = ssub.s32 %s4, 1
    %v6 = vld [vmem:[%s0] sm:%s5]
    %7 = vst [vmem:[#allocation3] sm:%s5] %v6
    %v8 = vld [vmem:[#allocation3] sm:$0x1]
    %vm9 = vcmask 64512
    %10 = vst.msk [vmem:[#allocation2] sm:$0x1] %vm9, %v8
    %v11 = vld [vmem:[#allocation3] sm:$0x1]
    %12 = vrot.lane.b32.xlu0 %v11, 120
    %v13 = vpop.permute.xlu0 %12
    %vm14 = vcmask 64512
    %s15 = scalar_lea.vmem [#allocation2], 1
    %16 = vst.msk [vmem:[%s15] sm:$0x1] %vm14, %v13
    %s18 = sshll.u32 1, 2
    %s19 = ssub.s32 %s18, 1
    %v21 = vld [vmem:[#allocation2] sm:%s19]
    %s22 = sshll.u32 1, 2
    %s23 = ssub.s32 %s22, 1
    %24 = vst [vmem:[#allocation0] sm:%s23] %v21
    %s26 = ssub.s32 32, 32
    %27 = vsyncadd [#allocation1], %s26
    %s29 = sshll.u32 [#allocation0], 4
    %s30 = int_to_ptr.vmem [resolvable:$true] %s29
    %32 = dma.vmem_to_hbm [thread:$0]  %s30, 32, %s1, [#allocation1]
    %33 = dma.done [#allocation1], 32
    %34 = vsyncpa [#allocation1], 1

// kernel: _fchead_forward.1
$region0: #{_fchead_forward.1}
  #allocation0 [shape = 'u32[]', space=smem, size = 0x4, offset = 0x4, fixed_abs, tag = 'smem constant byte address 0x4 - core index']
  #allocation1 [shape = 'u32[144,128]{1,0:T(1,128)}', space=vmem, size = 0x12000, scoped, tag = 'internal scratch']
  %s0 = inlined_call_operand.vmem [shape: bf16[16,1024], index: 0, kind: input, shape index: {}]
  %s1 = inlined_call_operand.vmem [shape: bf16[1024,32], index: 1, kind: input, shape index: {}]
  %s2 = inlined_call_operand.vmem [shape: f32[1,32], index: 2, kind: input, shape index: {}]
  %s3 = inlined_call_operand.vmem [shape: f32[2,32], index: 3, kind: input, shape index: {}]
  %s4 = inlined_call_operand.vmem [shape: f32[2,1], index: 4, kind: input, shape index: {}]
  %s5 = inlined_call_operand.vmem [shape: f32[2,16], index: 5, kind: output, shape index: {}]
  %s6 = sld [smem:[#allocation0]]
  $region30: #{_fchead_forward.1} parent=0
    _
  %s8 = ssub.s32 1, %s6
  %s9 = scalar_select 0, %s8, %s6
  // Predicated region
  $region2: #{_fchead_forward.1} parent=0 // pred_check
    _
  $region3: #{_fchead_forward.1} parent=0 // pred_check_branch
    %11 = sbr.rel (0) target = $region5
  $region4: #{_fchead_forward.1} parent=0 // pred_region
    _
  $region5: #{_fchead_forward.1} parent=0 // pred_fallthru
    _
  // Predicated region
  $region6: #{_fchead_forward.1} parent=0 // pred_check
    _
  $region7: #{_fchead_forward.1} parent=0 // pred_check_branch
    %13 = sbr.rel (0) target = $region9
  $region8: #{_fchead_forward.1} parent=0 // pred_region
    _
  $region9: #{_fchead_forward.1} parent=0 // pred_fallthru
    _
  // Predicated region
  $region10: #{_fchead_forward.1} parent=0 // pred_check
    _
  $region11: #{_fchead_forward.1} parent=0 // pred_check_branch
    %15 = sbr.rel (0) target = $region13
  $region12: #{_fchead_forward.1} parent=0 // pred_region
    _
  $region13: #{_fchead_forward.1} parent=0 // pred_fallthru
    _
  // Predicated region
  $region14: #{_fchead_forward.1} parent=0 // pred_check
    _
  $region15: #{_fchead_forward.1} parent=0 // pred_check_branch
    %17 = sbr.rel (0) target = $region17
  $region16: #{_fchead_forward.1} parent=0 // pred_region
    _
  $region17: #{_fchead_forward.1} parent=0 // pred_fallthru
    _
  // Predicated region
  $region18: #{_fchead_forward.1} parent=0 // pred_check
    _
  $region19: #{_fchead_forward.1} parent=0 // pred_check_branch
    %19 = sbr.rel (0) target = $region21
  $region20: #{_fchead_forward.1} parent=0 // pred_region
    _
  $region21: #{_fchead_forward.1} parent=0 // pred_fallthru
    _
  %v21 = vld [vmem:[%s0] sm:$0xff]
  %v22 = vld [vmem:[%s0 + $0x8] sm:$0xff]
  %v23 = vld [vmem:[%s0 + $0x10] sm:$0xff]
  %v24 = vld [vmem:[%s0 + $0x18] sm:$0xff]
  %v25 = vld [vmem:[%s0 + $0x20] sm:$0xff]
  %v26 = vld [vmem:[%s0 + $0x28] sm:$0xff]
  %v27 = vld [vmem:[%s0 + $0x30] sm:$0xff]
  %v28 = vld [vmem:[%s0 + $0x38] sm:$0xff]
  %v29 = vld [vmem:[%s1] sm:$0xf]
  %v30 = vld [vmem:[%s1 + $0x4] sm:$0xf]
  %v31 = vld [vmem:[%s1 + $0x8] sm:$0xf]
  %v32 = vld [vmem:[%s1 + $0xc] sm:$0xf]
  %v33 = vld [vmem:[%s1 + $0x10] sm:$0xf]
  %v34 = vld [vmem:[%s1 + $0x14] sm:$0xf]
  %v35 = vld [vmem:[%s1 + $0x18] sm:$0xf]
  %v36 = vld [vmem:[%s1 + $0x1c] sm:$0xf]
  %v37 = vld [vmem:[%s1 + $0x20] sm:$0xf]
  %v38 = vld [vmem:[%s1 + $0x24] sm:$0xf]
  %v39 = vld [vmem:[%s1 + $0x28] sm:$0xf]
  %v40 = vld [vmem:[%s1 + $0x2c] sm:$0xf]
  %v41 = vld [vmem:[%s1 + $0x30] sm:$0xf]
  %v42 = vld [vmem:[%s1 + $0x34] sm:$0xf]
  %v43 = vld [vmem:[%s1 + $0x38] sm:$0xf]
  %v44 = vld [vmem:[%s1 + $0x3c] sm:$0xf]
  %v45 = vld [vmem:[%s1 + $0x40] sm:$0xf]
  %v46 = vld [vmem:[%s1 + $0x44] sm:$0xf]
  %v47 = vld [vmem:[%s1 + $0x48] sm:$0xf]
  %v48 = vld [vmem:[%s1 + $0x4c] sm:$0xf]
  %v49 = vld [vmem:[%s1 + $0x50] sm:$0xf]
  %v50 = vld [vmem:[%s1 + $0x54] sm:$0xf]
  %v51 = vld [vmem:[%s1 + $0x58] sm:$0xf]
  %v52 = vld [vmem:[%s1 + $0x5c] sm:$0xf]
  %v53 = vld [vmem:[%s1 + $0x60] sm:$0xf]
  %v54 = vld [vmem:[%s1 + $0x64] sm:$0xf]
  %v55 = vld [vmem:[%s1 + $0x68] sm:$0xf]
  %v56 = vld [vmem:[%s1 + $0x6c] sm:$0xf]
  %v57 = vld [vmem:[%s1 + $0x70] sm:$0xf]
  %v58 = vld [vmem:[%s1 + $0x74] sm:$0xf]
  %v59 = vld [vmem:[%s1 + $0x78] sm:$0xf]
  %v60 = vld [vmem:[%s1 + $0x7c] sm:$0xf]
  %v61 = vld [vmem:[%s1 + $0x80] sm:$0xf]
  %v62 = vld [vmem:[%s1 + $0x84] sm:$0xf]
  %v63 = vld [vmem:[%s1 + $0x88] sm:$0xf]
  %v64 = vld [vmem:[%s1 + $0x8c] sm:$0xf]
  %v65 = vld [vmem:[%s1 + $0x90] sm:$0xf]
  %v66 = vld [vmem:[%s1 + $0x94] sm:$0xf]
  %v67 = vld [vmem:[%s1 + $0x98] sm:$0xf]
  %v68 = vld [vmem:[%s1 + $0x9c] sm:$0xf]
  %v69 = vld [vmem:[%s1 + $0xa0] sm:$0xf]
  %v70 = vld [vmem:[%s1 + $0xa4] sm:$0xf]
  %v71 = vld [vmem:[%s1 + $0xa8] sm:$0xf]
  %v72 = vld [vmem:[%s1 + $0xac] sm:$0xf]
  %v73 = vld [vmem:[%s1 + $0xb0] sm:$0xf]
  %v74 = vld [vmem:[%s1 + $0xb4] sm:$0xf]
  %v75 = vld [vmem:[%s1 + $0xb8] sm:$0xf]
  %v76 = vld [vmem:[%s1 + $0xbc] sm:$0xf]
  %v77 = vld [vmem:[%s1 + $0xc0] sm:$0xf]
  %v78 = vld [vmem:[%s1 + $0xc4] sm:$0xf]
  %v79 = vld [vmem:[%s1 + $0xc8] sm:$0xf]
  %v80 = vld [vmem:[%s1 + $0xcc] sm:$0xf]
  %v81 = vld [vmem:[%s1 + $0xd0] sm:$0xf]
  %v82 = vld [vmem:[%s1 + $0xd4] sm:$0xf]
  %v83 = vld [vmem:[%s1 + $0xd8] sm:$0xf]
  %v84 = vld [vmem:[%s1 + $0xdc] sm:$0xf]
  %v85 = vld [vmem:[%s1 + $0xe0] sm:$0xf]
  %v86 = vld [vmem:[%s1 + $0xe4] sm:$0xf]
  %v87 = vld [vmem:[%s1 + $0xe8] sm:$0xf]
  %v88 = vld [vmem:[%s1 + $0xec] sm:$0xf]
  %v89 = vld [vmem:[%s1 + $0xf0] sm:$0xf]
  %v90 = vld [vmem:[%s1 + $0xf4] sm:$0xf]
  %v91 = vld [vmem:[%s1 + $0xf8] sm:$0xf]
  %v92 = vld [vmem:[%s1 + $0xfc] sm:$0xf]
  %v93 = vld [vmem:[%s1 + $0x100] sm:$0xf]
  %v94 = vld [vmem:[%s1 + $0x104] sm:$0xf]
  %v95 = vld [vmem:[%s1 + $0x108] sm:$0xf]
  %v96 = vld [vmem:[%s1 + $0x10c] sm:$0xf]
  %v97 = vld [vmem:[%s1 + $0x110] sm:$0xf]
  %v98 = vld [vmem:[%s1 + $0x114] sm:$0xf]
  %v99 = vld [vmem:[%s1 + $0x118] sm:$0xf]
  %v100 = vld [vmem:[%s1 + $0x11c] sm:$0xf]
  %v101 = vld [vmem:[%s1 + $0x120] sm:$0xf]
  %v102 = vld [vmem:[%s1 + $0x124] sm:$0xf]
  %v103 = vld [vmem:[%s1 + $0x128] sm:$0xf]
  %v104 = vld [vmem:[%s1 + $0x12c] sm:$0xf]
  %v105 = vld [vmem:[%s1 + $0x130] sm:$0xf]
  %v106 = vld [vmem:[%s1 + $0x134] sm:$0xf]
  %v107 = vld [vmem:[%s1 + $0x138] sm:$0xf]
  %v108 = vld [vmem:[%s1 + $0x13c] sm:$0xf]
  %v109 = vld [vmem:[%s1 + $0x140] sm:$0xf]
  %v110 = vld [vmem:[%s1 + $0x144] sm:$0xf]
  %v111 = vld [vmem:[%s1 + $0x148] sm:$0xf]
  %v112 = vld [vmem:[%s1 + $0x14c] sm:$0xf]
  %v113 = vld [vmem:[%s1 + $0x150] sm:$0xf]
  %v114 = vld [vmem:[%s1 + $0x154] sm:$0xf]
  %v115 = vld [vmem:[%s1 + $0x158] sm:$0xf]
  %v116 = vld [vmem:[%s1 + $0x15c] sm:$0xf]
  %v117 = vld [vmem:[%s1 + $0x160] sm:$0xf]
  %v118 = vld [vmem:[%s1 + $0x164] sm:$0xf]
  %v119 = vld [vmem:[%s1 + $0x168] sm:$0xf]
  %v120 = vld [vmem:[%s1 + $0x16c] sm:$0xf]
  %v121 = vld [vmem:[%s1 + $0x170] sm:$0xf]
  %v122 = vld [vmem:[%s1 + $0x174] sm:$0xf]
  %v123 = vld [vmem:[%s1 + $0x178] sm:$0xf]
  %v124 = vld [vmem:[%s1 + $0x17c] sm:$0xf]
  %v125 = vld [vmem:[%s1 + $0x180] sm:$0xf]
  %v126 = vld [vmem:[%s1 + $0x184] sm:$0xf]
  %v127 = vld [vmem:[%s1 + $0x188] sm:$0xf]
  %v128 = vld [vmem:[%s1 + $0x18c] sm:$0xf]
  %v129 = vld [vmem:[%s1 + $0x190] sm:$0xf]
  %v130 = vld [vmem:[%s1 + $0x194] sm:$0xf]
  %v131 = vld [vmem:[%s1 + $0x198] sm:$0xf]
  %v132 = vld [vmem:[%s1 + $0x19c] sm:$0xf]
  %v133 = vld [vmem:[%s1 + $0x1a0] sm:$0xf]
  %v134 = vld [vmem:[%s1 + $0x1a4] sm:$0xf]
  %v135 = vld [vmem:[%s1 + $0x1a8] sm:$0xf]
  %v136 = vld [vmem:[%s1 + $0x1ac] sm:$0xf]
  %v137 = vld [vmem:[%s1 + $0x1b0] sm:$0xf]
  %v138 = vld [vmem:[%s1 + $0x1b4] sm:$0xf]
  %v139 = vld [vmem:[%s1 + $0x1b8] sm:$0xf]
  %v140 = vld [vmem:[%s1 + $0x1bc] sm:$0xf]
  %v141 = vld [vmem:[%s1 + $0x1c0] sm:$0xf]
  %v142 = vld [vmem:[%s1 + $0x1c4] sm:$0xf]
  %v143 = vld [vmem:[%s1 + $0x1c8] sm:$0xf]
  %v144 = vld [vmem:[%s1 + $0x1cc] sm:$0xf]
  %v145 = vld [vmem:[%s1 + $0x1d0] sm:$0xf]
  %v146 = vld [vmem:[%s1 + $0x1d4] sm:$0xf]
  %v147 = vld [vmem:[%s1 + $0x1d8] sm:$0xf]
  %v148 = vld [vmem:[%s1 + $0x1dc] sm:$0xf]
  %v149 = vld [vmem:[%s1 + $0x1e0] sm:$0xf]
  %v150 = vld [vmem:[%s1 + $0x1e4] sm:$0xf]
  %v151 = vld [vmem:[%s1 + $0x1e8] sm:$0xf]
  %v152 = vld [vmem:[%s1 + $0x1ec] sm:$0xf]
  %v153 = vld [vmem:[%s1 + $0x1f0] sm:$0xf]
  %v154 = vld [vmem:[%s1 + $0x1f4] sm:$0xf]
  %v155 = vld [vmem:[%s1 + $0x1f8] sm:$0xf]
  %v156 = vld [vmem:[%s1 + $0x1fc] sm:$0xf]
  %v157 = vld [vmem:[%s2] sm:$0x1]
  %v159 = vlaneseq
  %v160 = vshrl.u32 %v159, 7
  %v161 = vsub.s32 0, %v160
  %v162 = vrot.slane %v157, %v161
  %v172 = vunpack.c.l.b16 %v21
  %v173 = vunpack.c.h.b16 %v21
  %v174 = vunpack.c.l.b16 %v22
  %v175 = vunpack.c.h.b16 %v22
  %v176 = vunpack.c.l.b16 %v23
  %v177 = vunpack.c.h.b16 %v23
  %v178 = vunpack.c.l.b16 %v24
  %v179 = vunpack.c.h.b16 %v24
  %v180 = vunpack.c.l.b16 %v25
  %v181 = vunpack.c.h.b16 %v25
  %v182 = vunpack.c.l.b16 %v26
  %v183 = vunpack.c.h.b16 %v26
  %v184 = vunpack.c.l.b16 %v27
  %v185 = vunpack.c.h.b16 %v27
  %v186 = vunpack.c.l.b16 %v28
  %v187 = vunpack.c.h.b16 %v28
  %v188 = vpack.c.b16 %v180, %v172
  %v189 = vpack.c.b16 %v181, %v173
  %v190 = vpack.c.b16 %v182, %v174
  %v191 = vpack.c.b16 %v183, %v175
  %v192 = vpack.c.b16 %v184, %v176
  %v193 = vpack.c.b16 %v185, %v177
  %v194 = vpack.c.b16 %v186, %v178
  %v195 = vpack.c.b16 %v187, %v179
  %v332 = vunpack.c.l.b16 %v29
  %v333 = vunpack.c.l.b16 %v30
  %v334 = vunpack.c.l.b16 %v31
  %v335 = vunpack.c.l.b16 %v32
  %v336 = vunpack.c.l.b16 %v33
  %v337 = vunpack.c.l.b16 %v34
  %v338 = vunpack.c.l.b16 %v35
  %v339 = vunpack.c.l.b16 %v36
  %v340 = vunpack.c.l.b16 %v37
  %v341 = vunpack.c.l.b16 %v38
  %v342 = vunpack.c.l.b16 %v39
  %v343 = vunpack.c.l.b16 %v40
  %v344 = vunpack.c.l.b16 %v41
  %v345 = vunpack.c.l.b16 %v42
  %v346 = vunpack.c.l.b16 %v43
  %v347 = vunpack.c.l.b16 %v44
  %v348 = vunpack.c.l.b16 %v45
  %v349 = vunpack.c.l.b16 %v46
  %v350 = vunpack.c.l.b16 %v47
  %v351 = vunpack.c.l.b16 %v48
  %v352 = vunpack.c.l.b16 %v49
  %v353 = vunpack.c.l.b16 %v50
  %v354 = vunpack.c.l.b16 %v51
  %v355 = vunpack.c.l.b16 %v52
  %v356 = vunpack.c.l.b16 %v53
  %v357 = vunpack.c.l.b16 %v54
  %v358 = vunpack.c.l.b16 %v55
  %v359 = vunpack.c.l.b16 %v56
  %v360 = vunpack.c.l.b16 %v57
  %v361 = vunpack.c.l.b16 %v58
  %v362 = vunpack.c.l.b16 %v59
  %v363 = vunpack.c.l.b16 %v60
  %v364 = vunpack.c.l.b16 %v61
  %v365 = vunpack.c.l.b16 %v62
  %v366 = vunpack.c.l.b16 %v63
  %v367 = vunpack.c.l.b16 %v64
  %v368 = vunpack.c.l.b16 %v65
  %v369 = vunpack.c.l.b16 %v66
  %v370 = vunpack.c.l.b16 %v67
  %v371 = vunpack.c.l.b16 %v68
  %v372 = vunpack.c.l.b16 %v69
  %v373 = vunpack.c.l.b16 %v70
  %v374 = vunpack.c.l.b16 %v71
  %v375 = vunpack.c.l.b16 %v72
  %v376 = vunpack.c.l.b16 %v73
  %v377 = vunpack.c.l.b16 %v74
  %v378 = vunpack.c.l.b16 %v75
  %v379 = vunpack.c.l.b16 %v76
  %v380 = vunpack.c.l.b16 %v77
  %v381 = vunpack.c.l.b16 %v78
  %v382 = vunpack.c.l.b16 %v79
  %v383 = vunpack.c.l.b16 %v80
  %v384 = vunpack.c.l.b16 %v81
  %v385 = vunpack.c.l.b16 %v82
  %v386 = vunpack.c.l.b16 %v83
  %v387 = vunpack.c.l.b16 %v84
  %v388 = vunpack.c.l.b16 %v85
  %v389 = vunpack.c.l.b16 %v86
  %v390 = vunpack.c.l.b16 %v87
  %v391 = vunpack.c.l.b16 %v88
  %v392 = vunpack.c.l.b16 %v89
  %v393 = vunpack.c.l.b16 %v90
  %v394 = vunpack.c.l.b16 %v91
  %v395 = vunpack.c.l.b16 %v92
  %v396 = vunpack.c.l.b16 %v93
  %v397 = vunpack.c.l.b16 %v94
  %v398 = vunpack.c.l.b16 %v95
  %v399 = vunpack.c.l.b16 %v96
  %v400 = vunpack.c.l.b16 %v97
  %v401 = vunpack.c.l.b16 %v98
  %v402 = vunpack.c.l.b16 %v99
  %v403 = vunpack.c.l.b16 %v100
  %v404 = vunpack.c.l.b16 %v101
  %v405 = vunpack.c.l.b16 %v102
  %v406 = vunpack.c.l.b16 %v103
  %v407 = vunpack.c.l.b16 %v104
  %v408 = vunpack.c.l.b16 %v105
  %v409 = vunpack.c.l.b16 %v106
  %v410 = vunpack.c.l.b16 %v107
  %v411 = vunpack.c.l.b16 %v108
  %v412 = vunpack.c.l.b16 %v109
  %v413 = vunpack.c.l.b16 %v110
  %v414 = vunpack.c.l.b16 %v111
  %v415 = vunpack.c.l.b16 %v112
  %v416 = vunpack.c.l.b16 %v113
  %v417 = vunpack.c.l.b16 %v114
  %v418 = vunpack.c.l.b16 %v115
  %v419 = vunpack.c.l.b16 %v116
  %v420 = vunpack.c.l.b16 %v117
  %v421 = vunpack.c.l.b16 %v118
  %v422 = vunpack.c.l.b16 %v119
  %v423 = vunpack.c.l.b16 %v120
  %v424 = vunpack.c.l.b16 %v121
  %v425 = vunpack.c.l.b16 %v122
  %v426 = vunpack.c.l.b16 %v123
  %v427 = vunpack.c.l.b16 %v124
  %v428 = vunpack.c.l.b16 %v125
  %v429 = vunpack.c.l.b16 %v126
  %v430 = vunpack.c.l.b16 %v127
  %v431 = vunpack.c.l.b16 %v128
  %v432 = vunpack.c.l.b16 %v129
  %v433 = vunpack.c.l.b16 %v130
  %v434 = vunpack.c.l.b16 %v131
  %v435 = vunpack.c.l.b16 %v132
  %v436 = vunpack.c.l.b16 %v133
  %v437 = vunpack.c.l.b16 %v134
  %v438 = vunpack.c.l.b16 %v135
  %v439 = vunpack.c.l.b16 %v136
  %v440 = vunpack.c.l.b16 %v137
  %v441 = vunpack.c.l.b16 %v138
  %v442 = vunpack.c.l.b16 %v139
  %v443 = vunpack.c.l.b16 %v140
  %v444 = vunpack.c.l.b16 %v141
  %v445 = vunpack.c.l.b16 %v142
  %v446 = vunpack.c.l.b16 %v143
  %v447 = vunpack.c.l.b16 %v144
  %v448 = vunpack.c.l.b16 %v145
  %v449 = vunpack.c.l.b16 %v146
  %v450 = vunpack.c.l.b16 %v147
  %v451 = vunpack.c.l.b16 %v148
  %v452 = vunpack.c.l.b16 %v149
  %v453 = vunpack.c.l.b16 %v150
  %v454 = vunpack.c.l.b16 %v151
  %v455 = vunpack.c.l.b16 %v152
  %v456 = vunpack.c.l.b16 %v153
  %v457 = vunpack.c.l.b16 %v154
  %v458 = vunpack.c.l.b16 %v155
  %v459 = vunpack.c.l.b16 %v156
  %v460 = vpack.c.b16 %v333, %v332
  %v461 = vpack.c.b16 %v335, %v334
  %v462 = vpack.c.b16 %v337, %v336
  %v463 = vpack.c.b16 %v339, %v338
  %v464 = vpack.c.b16 %v341, %v340
  %v465 = vpack.c.b16 %v343, %v342
  %v466 = vpack.c.b16 %v345, %v344
  %v467 = vpack.c.b16 %v347, %v346
  %v468 = vpack.c.b16 %v349, %v348
  %v469 = vpack.c.b16 %v351, %v350
  %v470 = vpack.c.b16 %v353, %v352
  %v471 = vpack.c.b16 %v355, %v354
  %v472 = vpack.c.b16 %v357, %v356
  %v473 = vpack.c.b16 %v359, %v358
  %v474 = vpack.c.b16 %v361, %v360
  %v475 = vpack.c.b16 %v363, %v362
  %v476 = vpack.c.b16 %v365, %v364
  %v477 = vpack.c.b16 %v367, %v366
  %v478 = vpack.c.b16 %v369, %v368
  %v479 = vpack.c.b16 %v371, %v370
  %v480 = vpack.c.b16 %v373, %v372
  %v481 = vpack.c.b16 %v375, %v374
  %v482 = vpack.c.b16 %v377, %v376
  %v483 = vpack.c.b16 %v379, %v378
  %v484 = vpack.c.b16 %v381, %v380
  %v485 = vpack.c.b16 %v383, %v382
  %v486 = vpack.c.b16 %v385, %v384
  %v487 = vpack.c.b16 %v387, %v386
  %v488 = vpack.c.b16 %v389, %v388
  %v489 = vpack.c.b16 %v391, %v390
  %v490 = vpack.c.b16 %v393, %v392
  %v491 = vpack.c.b16 %v395, %v394
  %v492 = vpack.c.b16 %v397, %v396
  %v493 = vpack.c.b16 %v399, %v398
  %v494 = vpack.c.b16 %v401, %v400
  %v495 = vpack.c.b16 %v403, %v402
  %v496 = vpack.c.b16 %v405, %v404
  %v497 = vpack.c.b16 %v407, %v406
  %v498 = vpack.c.b16 %v409, %v408
  %v499 = vpack.c.b16 %v411, %v410
  %v500 = vpack.c.b16 %v413, %v412
  %v501 = vpack.c.b16 %v415, %v414
  %v502 = vpack.c.b16 %v417, %v416
  %v503 = vpack.c.b16 %v419, %v418
  %v504 = vpack.c.b16 %v421, %v420
  %v505 = vpack.c.b16 %v423, %v422
  %v506 = vpack.c.b16 %v425, %v424
  %v507 = vpack.c.b16 %v427, %v426
  %v508 = vpack.c.b16 %v429, %v428
  %v509 = vpack.c.b16 %v431, %v430
  %v510 = vpack.c.b16 %v433, %v432
  %v511 = vpack.c.b16 %v435, %v434
  %v512 = vpack.c.b16 %v437, %v436
  %v513 = vpack.c.b16 %v439, %v438
  %v514 = vpack.c.b16 %v441, %v440
  %v515 = vpack.c.b16 %v443, %v442
  %v516 = vpack.c.b16 %v445, %v444
  %v517 = vpack.c.b16 %v447, %v446
  %v518 = vpack.c.b16 %v449, %v448
  %v519 = vpack.c.b16 %v451, %v450
  %v520 = vpack.c.b16 %v453, %v452
  %v521 = vpack.c.b16 %v455, %v454
  %v522 = vpack.c.b16 %v457, %v456
  %v523 = vpack.c.b16 %v459, %v458
  %588 = vmatprep.subr.bf16.mxu0 0
  %589 = vmatpush1.bf16.msra.mxu0 %v467
  %590 = vmatprep.subr.bf16.mxu0 0
  %591 = vmatpush1.bf16.msra.mxu0 %v466
  %592 = vmatprep.subr.bf16.mxu0 0
  %593 = vmatpush1.bf16.msra.mxu0 %v465
  %594 = vmatprep.subr.bf16.mxu0 0
  %595 = vmatpush1.bf16.msra.mxu0 %v464
  %596 = vmatprep.subr.bf16.mxu0 0
  %597 = vmatpush1.bf16.msra.mxu0 %v463
  %598 = vmatprep.subr.bf16.mxu0 0
  %599 = vmatpush1.bf16.msra.mxu0 %v462
  %600 = vmatprep.subr.bf16.mxu0 0
  %601 = vmatpush1.bf16.msra.mxu0 %v461
  %602 = vmatprep.subr.bf16.mxu0 0
  %603 = vmatpush1.bf16.msra.mxu0 %v460
  %604 = vmatprep.subr.bf16.mxu0 0
  %605 = vmatpush2.bf16.msra.mxu0 %v475
  %606 = vmatprep.subr.bf16.mxu0 0
  %607 = vmatpush2.bf16.msra.mxu0 %v474
  %608 = vmatprep.subr.bf16.mxu0 0
  %609 = vmatpush2.bf16.msra.mxu0 %v473
  %610 = vmatprep.subr.bf16.mxu0 0
  %611 = vmatpush2.bf16.msra.mxu0 %v472
  %612 = vmatprep.subr.bf16.mxu0 0
  %613 = vmatpush2.bf16.msra.mxu0 %v471
  %614 = vmatprep.subr.bf16.mxu0 0
  %615 = vmatpush2.bf16.msra.mxu0 %v470
  %616 = vmatprep.subr.bf16.mxu0 0
  %617 = vmatpush2.bf16.msra.mxu0 %v469
  %618 = vmatprep.subr.bf16.mxu0 0
  %619 = vmatpush2.bf16.msra.mxu0 %v468
  %620 = vmatprep.mubr.bf16.mxu0 %v189
  %621 = vmatmul.mubr.bf16.gmra.mxu0 %v188
  %v622 = vpop.f32.mrf.mxu0
  %v623 = vadd.f32 %v162, %v622
  %v624 = vpop.f32.mrf.mxu0
  %v625 = vpop.f32.mrf.mxu0
  %v626 = vadd.f32 %v162, %v625
  %v627 = vpop.f32.mrf.mxu0
  %628 = vdwg.mxu0
  %629 = vmatprep.subr.bf16.mxu0 0
  %630 = vmatpush1.bf16.msra.mxu0 %v483
  %631 = vmatprep.subr.bf16.mxu0 0
  %632 = vmatpush1.bf16.msra.mxu0 %v482
  %633 = vmatprep.subr.bf16.mxu0 0
  %634 = vmatpush1.bf16.msra.mxu0 %v481
  %635 = vmatprep.subr.bf16.mxu0 0
  %636 = vmatpush1.bf16.msra.mxu0 %v480
  %637 = vmatprep.subr.bf16.mxu0 0
  %638 = vmatpush1.bf16.msra.mxu0 %v479
  %639 = vmatprep.subr.bf16.mxu0 0
  %640 = vmatpush1.bf16.msra.mxu0 %v478
  %641 = vmatprep.subr.bf16.mxu0 0
  %642 = vmatpush1.bf16.msra.mxu0 %v477
  %643 = vmatprep.subr.bf16.mxu0 0
  %644 = vmatpush1.bf16.msra.mxu0 %v476
  %645 = vmatprep.subr.bf16.mxu0 0
  %646 = vmatpush2.bf16.msra.mxu0 %v491
  %647 = vmatprep.subr.bf16.mxu0 0
  %648 = vmatpush2.bf16.msra.mxu0 %v490
  %649 = vmatprep.subr.bf16.mxu0 0
  %650 = vmatpush2.bf16.msra.mxu0 %v489
  %651 = vmatprep.subr.bf16.mxu0 0
  %652 = vmatpush2.bf16.msra.mxu0 %v488
  %653 = vmatprep.subr.bf16.mxu0 0
  %654 = vmatpush2.bf16.msra.mxu0 %v487
  %655 = vmatprep.subr.bf16.mxu0 0
  %656 = vmatpush2.bf16.msra.mxu0 %v486
  %657 = vmatprep.subr.bf16.mxu0 0
  %658 = vmatpush2.bf16.msra.mxu0 %v485
  %659 = vmatprep.subr.bf16.mxu0 0
  %660 = vmatpush2.bf16.msra.mxu0 %v484
  %661 = vmatprep.mubr.bf16.mxu0 %v191
  %662 = vmatmul.mubr.bf16.gmra.mxu0 %v190
  %v663 = vpop.f32.mrf.mxu0
  %v664 = vadd.f32 %v623, %v663
  %v665 = vpop.f32.mrf.mxu0
  %v666 = vpop.f32.mrf.mxu0
  %v667 = vadd.f32 %v626, %v666
  %v668 = vpop.f32.mrf.mxu0
  %669 = vdwg.mxu0
  %670 = vmatprep.subr.bf16.mxu0 0
  %671 = vmatpush1.bf16.msra.mxu0 %v499
  %672 = vmatprep.subr.bf16.mxu0 0
  %673 = vmatpush1.bf16.msra.mxu0 %v498
  %674 = vmatprep.subr.bf16.mxu0 0
  %675 = vmatpush1.bf16.msra.mxu0 %v497
  %676 = vmatprep.subr.bf16.mxu0 0
  %677 = vmatpush1.bf16.msra.mxu0 %v496
  %678 = vmatprep.subr.bf16.mxu0 0
  %679 = vmatpush1.bf16.msra.mxu0 %v495
  %680 = vmatprep.subr.bf16.mxu0 0
  %681 = vmatpush1.bf16.msra.mxu0 %v494
  %682 = vmatprep.subr.bf16.mxu0 0
  %683 = vmatpush1.bf16.msra.mxu0 %v493
  %684 = vmatprep.subr.bf16.mxu0 0
  %685 = vmatpush1.bf16.msra.mxu0 %v492
  %686 = vmatprep.subr.bf16.mxu0 0
  %687 = vmatpush2.bf16.msra.mxu0 %v507
  %688 = vmatprep.subr.bf16.mxu0 0
  %689 = vmatpush2.bf16.msra.mxu0 %v506
  %690 = vmatprep.subr.bf16.mxu0 0
  %691 = vmatpush2.bf16.msra.mxu0 %v505
  %692 = vmatprep.subr.bf16.mxu0 0
  %693 = vmatpush2.bf16.msra.mxu0 %v504
  %694 = vmatprep.subr.bf16.mxu0 0
  %695 = vmatpush2.bf16.msra.mxu0 %v503
  %696 = vmatprep.subr.bf16.mxu0 0
  %697 = vmatpush2.bf16.msra.mxu0 %v502
  %698 = vmatprep.subr.bf16.mxu0 0
  %699 = vmatpush2.bf16.msra.mxu0 %v501
  %700 = vmatprep.subr.bf16.mxu0 0
  %701 = vmatpush2.bf16.msra.mxu0 %v500
  %702 = vmatprep.mubr.bf16.mxu0 %v193
  %703 = vmatmul.mubr.bf16.gmra.mxu0 %v192
  %v704 = vpop.f32.mrf.mxu0
  %v705 = vadd.f32 %v664, %v704
  %v706 = vpop.f32.mrf.mxu0
  %v707 = vpop.f32.mrf.mxu0
  %v708 = vadd.f32 %v667, %v707
  %v709 = vpop.f32.mrf.mxu0
  %710 = vdwg.mxu0
  %711 = vmatprep.subr.bf16.mxu0 0
  %712 = vmatpush1.bf16.msra.mxu0 %v515
  %713 = vmatprep.subr.bf16.mxu0 0
  %714 = vmatpush1.bf16.msra.mxu0 %v514
  %715 = vmatprep.subr.bf16.mxu0 0
  %716 = vmatpush1.bf16.msra.mxu0 %v513
  %717 = vmatprep.subr.bf16.mxu0 0
  %718 = vmatpush1.bf16.msra.mxu0 %v512
  %719 = vmatprep.subr.bf16.mxu0 0
  %720 = vmatpush1.bf16.msra.mxu0 %v511
  %721 = vmatprep.subr.bf16.mxu0 0
  %722 = vmatpush1.bf16.msra.mxu0 %v510
  %723 = vmatprep.subr.bf16.mxu0 0
  %724 = vmatpush1.bf16.msra.mxu0 %v509
  %725 = vmatprep.subr.bf16.mxu0 0
  %726 = vmatpush1.bf16.msra.mxu0 %v508
  %727 = vmatprep.subr.bf16.mxu0 0
  %728 = vmatpush2.bf16.msra.mxu0 %v523
  %729 = vmatprep.subr.bf16.mxu0 0
  %730 = vmatpush2.bf16.msra.mxu0 %v522
  %731 = vmatprep.subr.bf16.mxu0 0
  %732 = vmatpush2.bf16.msra.mxu0 %v521
  %733 = vmatprep.subr.bf16.mxu0 0
  %734 = vmatpush2.bf16.msra.mxu0 %v520
  %735 = vmatprep.subr.bf16.mxu0 0
  %736 = vmatpush2.bf16.msra.mxu0 %v519
  %737 = vmatprep.subr.bf16.mxu0 0
  %738 = vmatpush2.bf16.msra.mxu0 %v518
  %739 = vmatprep.subr.bf16.mxu0 0
  %740 = vmatpush2.bf16.msra.mxu0 %v517
  %741 = vmatprep.subr.bf16.mxu0 0
  %742 = vmatpush2.bf16.msra.mxu0 %v516
  %743 = vmatprep.mubr.bf16.mxu0 %v195
  %744 = vmatmul.mubr.bf16.gmra.mxu0 %v194
  %v745 = vpop.f32.mrf.mxu0
  %v746 = vadd.f32 %v705, %v745
  %v747 = vpop.f32.mrf.mxu0
  %v748 = vpop.f32.mrf.mxu0
  %v749 = vadd.f32 %v708, %v748
  %v750 = vpop.f32.mrf.mxu0
  %751 = vdwg.mxu0
  %v752 = vmax.f32 %v746, 0.0
  %v753 = vmax.f32 %v749, 0.0
  %v754 = vld [vmem:[%s3] sm:$0x3]
  %v755 = vld [vmem:[%s4] sm:$0x3]
  %757 = vset.pattern.permute.xlu0 0
  %758 = vperm.xlu0 %757, %v755
  %v759 = vpop.permute.xlu0 %758
  %vm761 = vcmask 261120
  %v763 = vsel %vm761, %v754, 0
  %v766 = vsel %vm761, %v752, 0
  %v769 = vsel %vm761, %v753, 0
  %771 = vmatprep.subr.mxu0 0.0
  %772 = vmatpush1.xpose.msra.mxu0 0.0
  %773 = vmatprep.subr.mxu0 0.0
  %774 = vmatpush1.xpose.msra.mxu0 0.0
  %775 = vmatprep.subr.mxu0 0.0
  %776 = vmatpush1.xpose.msra.mxu0 0.0
  %777 = vmatprep.subr.mxu0 0.0
  %778 = vmatpush1.xpose.msra.mxu0 0.0
  %779 = vmatprep.subr.mxu0 0.0
  %780 = vmatpush1.xpose.msra.mxu0 0.0
  %781 = vmatprep.subr.mxu0 0.0
  %782 = vmatpush1.xpose.msra.mxu0 0.0
  %783 = vmatprep.subr.mxu0 0.0
  %784 = vmatpush1.xpose.msra.mxu0 0.0
  %785 = vmatprep.subr.mxu0 0.0
  %786 = vmatpush1.xpose.msra.mxu0 0.0
  %787 = vmatprep.subr.mxu0 0.0
  %788 = vmatpush1.xpose.msra.mxu0 0.0
  %789 = vmatprep.subr.mxu0 0.0
  %790 = vmatpush1.xpose.msra.mxu0 0.0
  %791 = vmatprep.subr.mxu0 0.0
  %792 = vmatpush1.xpose.msra.mxu0 0.0
  %793 = vmatprep.subr.mxu0 0.0
  %794 = vmatpush1.xpose.msra.mxu0 0.0
  %795 = vmatprep.subr.mxu0 0.0
  %796 = vmatpush1.xpose.msra.mxu0 0.0
  %797 = vmatprep.subr.mxu0 0.0
  %798 = vmatpush1.xpose.msra.mxu0 0.0
  %799 = vmatprep.subr.mxu0 0.0
  %800 = vmatpush1.xpose.msra.mxu0 %v769
  %801 = vmatprep.subr.mxu0 0.0
  %802 = vmatpush1.xpose.msra.mxu0 %v766
  %803 = vmatprep.subr.mxu0 0.0
  %804 = vmatpush2.xpose.msra.mxu0 0.0
  %805 = vmatprep.subr.mxu0 0.0
  %806 = vmatpush2.xpose.msra.mxu0 0.0
  %807 = vmatprep.subr.mxu0 0.0
  %808 = vmatpush2.xpose.msra.mxu0 0.0
  %809 = vmatprep.subr.mxu0 0.0
  %810 = vmatpush2.xpose.msra.mxu0 0.0
  %811 = vmatprep.subr.mxu0 0.0
  %812 = vmatpush2.xpose.msra.mxu0 0.0
  %813 = vmatprep.subr.mxu0 0.0
  %814 = vmatpush2.xpose.msra.mxu0 0.0
  %815 = vmatprep.subr.mxu0 0.0
  %816 = vmatpush2.xpose.msra.mxu0 0.0
  %817 = vmatprep.subr.mxu0 0.0
  %818 = vmatpush2.xpose.msra.mxu0 0.0
  %819 = vmatprep.subr.mxu0 0.0
  %820 = vmatpush2.xpose.msra.mxu0 0.0
  %821 = vmatprep.subr.mxu0 0.0
  %822 = vmatpush2.xpose.msra.mxu0 0.0
  %823 = vmatprep.subr.mxu0 0.0
  %824 = vmatpush2.xpose.msra.mxu0 0.0
  %825 = vmatprep.subr.mxu0 0.0
  %826 = vmatpush2.xpose.msra.mxu0 0.0
  %827 = vmatprep.subr.mxu0 0.0
  %828 = vmatpush2.xpose.msra.mxu0 0.0
  %829 = vmatprep.subr.mxu0 0.0
  %830 = vmatpush2.xpose.msra.mxu0 0.0
  %831 = vmatprep.subr.mxu0 0.0
  %832 = vmatpush2.xpose.msra.mxu0 0.0
  %833 = vmatprep.subr.mxu0 0.0
  %834 = vmatpush2.xpose.msra.mxu0 0.0
  %835 = vmatprep.mubr.f32.mxu0 0.0
  %836 = vmatmul.mubr.f32.gmra.mxu0 %v763
  %v837 = vpop.f32.mrf.mxu0
  %v838 = vadd.f32 %v759, %v837
  %v839 = vpop.f32.mrf.mxu0
  %840 = vdwg.mxu0
  %vm841 = vcmask 123904
  %842 = vst.msk [vmem:[%s5] sm:$0x3] %vm841, %v838
  // Predicated region
  $region22: #{_fchead_forward.1} parent=0 // pred_check
    _
  $region23: #{_fchead_forward.1} parent=0 // pred_check_branch
    %844 = sbr.rel (0) target = $region25
  $region24: #{_fchead_forward.1} parent=0 // pred_region
    _
  $region25: #{_fchead_forward.1} parent=0 // pred_fallthru
    _
  // Predicated region
  $region26: #{_fchead_forward.1} parent=0 // pred_check
    _
  $region27: #{_fchead_forward.1} parent=0 // pred_check_branch
    %846 = sbr.rel (0) target = $region29
  $region28: #{_fchead_forward.1} parent=0 // pred_region
    _
  $region29: #{_fchead_forward.1} parent=0 // pred_fallthru
    _

</llo_original>
